<compile_context>
chip_gen: v6e
topology: v6e:2x2x1
jax: 0.10.0
libtpu: 0.0.40
codegen_flags: <defaults>
</compile_context>

<pallas_src>
import functools

import jax
import jax.numpy as jnp
from jax.experimental import pallas as pl
from jax.experimental.pallas import tpu as pltpu

_MAX_TB = 256 * 1024   # 128*TB bytes of double-buffered in+out VMEM => 32 MiB here


def _round_up(n: int, m: int) -> int:
    return ((n + m - 1) // m) * m


def _pick_tile(batch: int, batch_tile: int) -> int:
    """128-aligned batch tile; prefers >=2 grid steps when the batch allows."""
    b128 = _round_up(batch, 128)
    tb = min(batch_tile, b128, _MAX_TB)
    tb = _round_up(max(tb, 128), 128)
    # Keep at least 2 grid steps (v7x megacore sharding + DMA/compute overlap).
    if b128 // tb < 2 and b128 >= 256:
        tb = _round_up(-(-b128 // 2), 128)
    return tb


def _simplenet_kernel(w1_ref, b1_ref, w2_ref, b2_ref, x_ref, o_ref):
    """x_ref: (3, TB) f32 VMEM (features on sublanes, batch on lanes).
    o_ref: (2, TB) f32 VMEM.
    w1_ref: (3, 3) SMEM, PyTorch (out, in) layout.  b1_ref: (3,) SMEM.
    w2_ref: (2, 3) SMEM, PyTorch (out, in) layout.  b2_ref: (2,) SMEM."""
    x = x_ref[...]                                    # (3, TB) lane-dense
    x_rows = [x[k:k + 1, :] for k in range(3)]        # three (1, TB) rows

    # Layer 1 + ReLU: h_j = relu(b1[j] + sum_k w1[j, k] * x[k, :])  (VPU FMAs;
    # bias initializes the accumulator).
    h_rows = []
    for j in range(3):
        acc = b1_ref[j] + w1_ref[j, 0] * x_rows[0]
        acc = acc + w1_ref[j, 1] * x_rows[1]
        acc = acc + w1_ref[j, 2] * x_rows[2]
        h_rows.append(jnp.maximum(acc, 0.0))

    # Layer 2: y_i = b2[i] + sum_k w2[i, k] * h[k, :].  Each row is stored
    # directly (lane-dense, unmasked vst) -- no concatenate epilogue copy.
    for i in range(2):
        acc = b2_ref[i] + w2_ref[i, 0] * h_rows[0]
        acc = acc + w2_ref[i, 1] * h_rows[1]
        acc = acc + w2_ref[i, 2] * h_rows[2]
        o_ref[i:i + 1, :] = acc.astype(o_ref.dtype)


def simplenet_forward_feature_major(xT, w1, b1, w2, b2, *, batch_tile=131072):
    """Feature-major path (no wrapper transposes).

    xT: (3, B) f32.  w1: (3, 3) / b1: (3,) / w2: (2, 3) / b2: (2,) in PyTorch
    nn.Linear (out, in) layout.  Returns (2, B) f32:
        y = w2 @ relu(w1 @ x + b1) + b2
    """
    B = xT.shape[1]
    TB = _pick_tile(B, batch_tile)
    Bp = _round_up(B, TB)

    xT = xT.astype(jnp.float32)
    if Bp != B:
        xT = jnp.pad(xT, ((0, 0), (0, Bp - B)))

    # Double-buffered in+out tiles pad to 8 sublanes -> ~128*TB bytes of VMEM.
    vmem_bytes = int(min(max(128 * TB + (4 << 20), 16 << 20), 48 << 20))

    yT = pl.pallas_call(
        _simplenet_kernel,
        out_shape=jax.ShapeDtypeStruct((2, Bp), jnp.float32),
        grid_spec=pl.GridSpec(
            grid=(Bp // TB,),
            in_specs=[
                # Tiny weights/biases: whole arrays resident in SMEM for the grid.
                pl.BlockSpec(memory_space=pltpu.MemorySpace.SMEM),   # w1 (3, 3)
                pl.BlockSpec(memory_space=pltpu.MemorySpace.SMEM),   # b1 (3,)
                pl.BlockSpec(memory_space=pltpu.MemorySpace.SMEM),   # w2 (2, 3)
                pl.BlockSpec(memory_space=pltpu.MemorySpace.SMEM),   # b2 (2,)
                # Activations: lane-dense (3, TB) batch tiles, auto-pipelined.
                pl.BlockSpec((3, TB), lambda i: (0, i)),
            ],
            out_specs=pl.BlockSpec((2, TB), lambda i: (0, i)),
        ),
        compiler_params=pltpu.CompilerParams(
            dimension_semantics=("parallel",),   # v7x: shard batch tiles over 2 TCs
            vmem_limit_bytes=vmem_bytes,         # v5e default scoped VMEM is 16 MiB
        ),
        cost_estimate=pl.CostEstimate(
            flops=30 * Bp, transcendentals=0, bytes_accessed=20 * Bp),
    )(w1.astype(jnp.float32), b1.astype(jnp.float32),
      w2.astype(jnp.float32), b2.astype(jnp.float32), xT)

    return yT[:, :B]


def simplenet_forward(x, w1, b1, w2, b2, *, batch_tile=131072):
    """(B, 3) -> (B, 2), PyTorch SimpleNet.forward semantics.

    Jit this wrapper so XLA fuses the layout transposes with neighbors; prefer
    the feature-major entry point when producer/consumer can use (3, B)/(2, B)."""
    yT = simplenet_forward_feature_major(
        x.astype(jnp.float32).T, w1, b1, w2, b2, batch_tile=batch_tile)
    return yT.T


if __name__ == "__main__":
    key = jax.random.PRNGKey(0)
    kx, k1, k2, k3, k4 = jax.random.split(key, 5)

    batch = 8
    x = jax.random.normal(kx, (batch, 3), dtype=jnp.float32)
    # PyTorch nn.Linear stores weight as (out_features, in_features).
    w1 = jax.random.normal(k1, (3, 3), dtype=jnp.float32) * 0.5   # (3, 3)
    b1 = jax.random.normal(k2, (3,), dtype=jnp.float32) * 0.1
    w2 = jax.random.normal(k3, (2, 3), dtype=jnp.float32) * 0.5   # (2, 3)
    b2 = jax.random.normal(k4, (2,), dtype=jnp.float32) * 0.1

    # Plain-JAX reference (same math as the PyTorch forward).
    ref = jnp.maximum(x @ w1.T + b1, 0.0) @ w2.T + b2

    # Small-batch path (grid=1).
    fwd = jax.jit(simplenet_forward)
    out = jax.block_until_ready(fwd(x, w1, b1, w2, b2))
    assert out.shape == (batch, 2)
    assert jnp.allclose(out, ref, atol=1e-5, rtol=1e-5)

    # Multi-tile + ragged-batch path (grid=4, padding sliced off), still small.
    big_batch = 1000
    xb = jax.random.normal(kx, (big_batch, 3), dtype=jnp.float32)
    refb = jnp.maximum(xb @ w1.T + b1, 0.0) @ w2.T + b2
    fwd_tiled = jax.jit(functools.partial(simplenet_forward, batch_tile=256))
    outb = jax.block_until_ready(fwd_tiled(xb, w1, b1, w2, b2))
    assert outb.shape == (big_batch, 2)
    assert jnp.allclose(outb, refb, atol=1e-5, rtol=1e-5)

    print("KERNEL_OK")
</pallas_src>

<mosaic_0001>
module attributes {stable_mosaic.version = 11 : i64} {
  func.func @_simplenet_kernel(%arg0: i32, %arg1: memref<3x3xf32, #tpu.memory_space<smem>>, %arg2: memref<3xf32, #tpu.memory_space<smem>>, %arg3: memref<2x3xf32, #tpu.memory_space<smem>>, %arg4: memref<2xf32, #tpu.memory_space<smem>>, %arg5: memref<3x128xf32, #tpu.memory_space<vmem>>, %arg6: memref<2x128xf32, #tpu.memory_space<vmem>>) attributes {dimension_semantics = [#tpu.dimension_semantics<parallel>], iteration_bounds = array<i64: 1>, scalar_prefetch = 0 : i64, scratch_operands = 0 : i64, tpu.core_type = #tpu.core_type<tc>, window_params = [{transform_indices = @transform_0, window_bounds = array<i64: 3, 3>}, {transform_indices = @transform_1, window_bounds = array<i64: 3>}, {transform_indices = @transform_2, window_bounds = array<i64: 2, 3>}, {transform_indices = @transform_3, window_bounds = array<i64: 2>}, {transform_indices = @transform_4, window_bounds = array<i64: 3, 128>}, {transform_indices = @transform_5, window_bounds = array<i64: 2, 128>}]} {
    %c0 = arith.constant 0 : index
    %c0_0 = arith.constant 0 : index
    %0 = vector.load %arg5[%c0, %c0_0] : memref<3x128xf32, #tpu.memory_space<vmem>>, vector<3x128xf32>
    %1 = vector.extract_strided_slice %0 {offsets = [0, 0], sizes = [1, 128], strides = [1, 1]} : vector<3x128xf32> to vector<1x128xf32>
    %2 = vector.extract_strided_slice %0 {offsets = [1, 0], sizes = [1, 128], strides = [1, 1]} : vector<3x128xf32> to vector<1x128xf32>
    %3 = vector.extract_strided_slice %0 {offsets = [2, 0], sizes = [1, 128], strides = [1, 1]} : vector<3x128xf32> to vector<1x128xf32>
    %c0_1 = arith.constant 0 : index
    %4 = memref.load %arg2[%c0_1] : memref<3xf32, #tpu.memory_space<smem>>
    %c0_2 = arith.constant 0 : index
    %c0_3 = arith.constant 0 : index
    %5 = memref.load %arg1[%c0_2, %c0_3] : memref<3x3xf32, #tpu.memory_space<smem>>
    %6 = vector.broadcast %5 : f32 to vector<1x128xf32>
    %7 = arith.mulf %6, %1 : vector<1x128xf32>
    %8 = vector.broadcast %4 : f32 to vector<1x128xf32>
    %9 = arith.addf %8, %7 : vector<1x128xf32>
    %c0_4 = arith.constant 0 : index
    %c1 = arith.constant 1 : index
    %10 = memref.load %arg1[%c0_4, %c1] : memref<3x3xf32, #tpu.memory_space<smem>>
    %11 = vector.broadcast %10 : f32 to vector<1x128xf32>
    %12 = arith.mulf %11, %2 : vector<1x128xf32>
    %13 = arith.addf %9, %12 : vector<1x128xf32>
    %c0_5 = arith.constant 0 : index
    %c2 = arith.constant 2 : index
    %14 = memref.load %arg1[%c0_5, %c2] : memref<3x3xf32, #tpu.memory_space<smem>>
    %15 = vector.broadcast %14 : f32 to vector<1x128xf32>
    %16 = arith.mulf %15, %3 : vector<1x128xf32>
    %17 = arith.addf %13, %16 : vector<1x128xf32>
    %cst = arith.constant 0.000000e+00 : f32
    %18 = vector.broadcast %cst : f32 to vector<1x128xf32>
    %19 = arith.maximumf %17, %18 : vector<1x128xf32>
    %c1_6 = arith.constant 1 : index
    %20 = memref.load %arg2[%c1_6] : memref<3xf32, #tpu.memory_space<smem>>
    %c1_7 = arith.constant 1 : index
    %c0_8 = arith.constant 0 : index
    %21 = memref.load %arg1[%c1_7, %c0_8] : memref<3x3xf32, #tpu.memory_space<smem>>
    %22 = vector.broadcast %21 : f32 to vector<1x128xf32>
    %23 = arith.mulf %22, %1 : vector<1x128xf32>
    %24 = vector.broadcast %20 : f32 to vector<1x128xf32>
    %25 = arith.addf %24, %23 : vector<1x128xf32>
    %c1_9 = arith.constant 1 : index
    %c1_10 = arith.constant 1 : index
    %26 = memref.load %arg1[%c1_9, %c1_10] : memref<3x3xf32, #tpu.memory_space<smem>>
    %27 = vector.broadcast %26 : f32 to vector<1x128xf32>
    %28 = arith.mulf %27, %2 : vector<1x128xf32>
    %29 = arith.addf %25, %28 : vector<1x128xf32>
    %c1_11 = arith.constant 1 : index
    %c2_12 = arith.constant 2 : index
    %30 = memref.load %arg1[%c1_11, %c2_12] : memref<3x3xf32, #tpu.memory_space<smem>>
    %31 = vector.broadcast %30 : f32 to vector<1x128xf32>
    %32 = arith.mulf %31, %3 : vector<1x128xf32>
    %33 = arith.addf %29, %32 : vector<1x128xf32>
    %cst_13 = arith.constant 0.000000e+00 : f32
    %34 = vector.broadcast %cst_13 : f32 to vector<1x128xf32>
    %35 = arith.maximumf %33, %34 : vector<1x128xf32>
    %c2_14 = arith.constant 2 : index
    %36 = memref.load %arg2[%c2_14] : memref<3xf32, #tpu.memory_space<smem>>
    %c2_15 = arith.constant 2 : index
    %c0_16 = arith.constant 0 : index
    %37 = memref.load %arg1[%c2_15, %c0_16] : memref<3x3xf32, #tpu.memory_space<smem>>
    %38 = vector.broadcast %37 : f32 to vector<1x128xf32>
    %39 = arith.mulf %38, %1 : vector<1x128xf32>
    %40 = vector.broadcast %36 : f32 to vector<1x128xf32>
    %41 = arith.addf %40, %39 : vector<1x128xf32>
    %c2_17 = arith.constant 2 : index
    %c1_18 = arith.constant 1 : index
    %42 = memref.load %arg1[%c2_17, %c1_18] : memref<3x3xf32, #tpu.memory_space<smem>>
    %43 = vector.broadcast %42 : f32 to vector<1x128xf32>
    %44 = arith.mulf %43, %2 : vector<1x128xf32>
    %45 = arith.addf %41, %44 : vector<1x128xf32>
    %c2_19 = arith.constant 2 : index
    %c2_20 = arith.constant 2 : index
    %46 = memref.load %arg1[%c2_19, %c2_20] : memref<3x3xf32, #tpu.memory_space<smem>>
    %47 = vector.broadcast %46 : f32 to vector<1x128xf32>
    %48 = arith.mulf %47, %3 : vector<1x128xf32>
    %49 = arith.addf %45, %48 : vector<1x128xf32>
    %cst_21 = arith.constant 0.000000e+00 : f32
    %50 = vector.broadcast %cst_21 : f32 to vector<1x128xf32>
    %51 = arith.maximumf %49, %50 : vector<1x128xf32>
    %c0_22 = arith.constant 0 : index
    %52 = memref.load %arg4[%c0_22] : memref<2xf32, #tpu.memory_space<smem>>
    %c0_23 = arith.constant 0 : index
    %c0_24 = arith.constant 0 : index
    %53 = memref.load %arg3[%c0_23, %c0_24] : memref<2x3xf32, #tpu.memory_space<smem>>
    %54 = vector.broadcast %53 : f32 to vector<1x128xf32>
    %55 = arith.mulf %54, %19 : vector<1x128xf32>
    %56 = vector.broadcast %52 : f32 to vector<1x128xf32>
    %57 = arith.addf %56, %55 : vector<1x128xf32>
    %c0_25 = arith.constant 0 : index
    %c1_26 = arith.constant 1 : index
    %58 = memref.load %arg3[%c0_25, %c1_26] : memref<2x3xf32, #tpu.memory_space<smem>>
    %59 = vector.broadcast %58 : f32 to vector<1x128xf32>
    %60 = arith.mulf %59, %35 : vector<1x128xf32>
    %61 = arith.addf %57, %60 : vector<1x128xf32>
    %c0_27 = arith.constant 0 : index
    %c2_28 = arith.constant 2 : index
    %62 = memref.load %arg3[%c0_27, %c2_28] : memref<2x3xf32, #tpu.memory_space<smem>>
    %63 = vector.broadcast %62 : f32 to vector<1x128xf32>
    %64 = arith.mulf %63, %51 : vector<1x128xf32>
    %65 = arith.addf %61, %64 : vector<1x128xf32>
    %c0_29 = arith.constant 0 : index
    %c0_30 = arith.constant 0 : index
    %66 = vector.load %arg6[%c0_29, %c0_30] : memref<2x128xf32, #tpu.memory_space<vmem>>, vector<1x128xf32>
    tpu.vector_store %arg6[%c0_29, %c0_30], %65 {strides = array<i32>} : memref<2x128xf32, #tpu.memory_space<vmem>>, vector<1x128xf32>,
    %c1_31 = arith.constant 1 : index
    %67 = memref.load %arg4[%c1_31] : memref<2xf32, #tpu.memory_space<smem>>
    %c1_32 = arith.constant 1 : index
    %c0_33 = arith.constant 0 : index
    %68 = memref.load %arg3[%c1_32, %c0_33] : memref<2x3xf32, #tpu.memory_space<smem>>
    %69 = vector.broadcast %68 : f32 to vector<1x128xf32>
    %70 = arith.mulf %69, %19 : vector<1x128xf32>
    %71 = vector.broadcast %67 : f32 to vector<1x128xf32>
    %72 = arith.addf %71, %70 : vector<1x128xf32>
    %c1_34 = arith.constant 1 : index
    %c1_35 = arith.constant 1 : index
    %73 = memref.load %arg3[%c1_34, %c1_35] : memref<2x3xf32, #tpu.memory_space<smem>>
    %74 = vector.broadcast %73 : f32 to vector<1x128xf32>
    %75 = arith.mulf %74, %35 : vector<1x128xf32>
    %76 = arith.addf %72, %75 : vector<1x128xf32>
    %c1_36 = arith.constant 1 : index
    %c2_37 = arith.constant 2 : index
    %77 = memref.load %arg3[%c1_36, %c2_37] : memref<2x3xf32, #tpu.memory_space<smem>>
    %78 = vector.broadcast %77 : f32 to vector<1x128xf32>
    %79 = arith.mulf %78, %51 : vector<1x128xf32>
    %80 = arith.addf %76, %79 : vector<1x128xf32>
    %c1_38 = arith.constant 1 : index
    %c0_39 = arith.constant 0 : index
    %81 = vector.load %arg6[%c1_38, %c0_39] : memref<2x128xf32, #tpu.memory_space<vmem>>, vector<1x128xf32>
    tpu.vector_store %arg6[%c1_38, %c0_39], %80 {strides = array<i32>} : memref<2x128xf32, #tpu.memory_space<vmem>>, vector<1x128xf32>,
    return
  }
  func.func @transform_0(%arg0: i32) -> (i32, i32) {
    %c0_i32 = arith.constant 0 : i32
    %c0_i32_0 = arith.constant 0 : i32
    %c0_i32_1 = arith.constant 0 : i32
    return %c0_i32, %c0_i32_0 : i32, i32
  }
  func.func @transform_1(%arg0: i32) -> i32 {
    %c0_i32 = arith.constant 0 : i32
    %c0_i32_0 = arith.constant 0 : i32
    return %c0_i32 : i32
  }
  func.func @transform_2(%arg0: i32) -> (i32, i32) {
    %c0_i32 = arith.constant 0 : i32
    %c0_i32_0 = arith.constant 0 : i32
    %c0_i32_1 = arith.constant 0 : i32
    return %c0_i32, %c0_i32_0 : i32, i32
  }
  func.func @transform_3(%arg0: i32) -> i32 {
    %c0_i32 = arith.constant 0 : i32
    %c0_i32_0 = arith.constant 0 : i32
    return %c0_i32 : i32
  }
  func.func @transform_4(%arg0: i32) -> (i32, i32) {
    %c0_i32 = arith.constant 0 : i32
    %c0_i32_0 = arith.constant 0 : i32
    return %c0_i32, %arg0 : i32, i32
  }
  func.func @transform_5(%arg0: i32) -> (i32, i32) {
    %c0_i32 = arith.constant 0 : i32
    %c0_i32_0 = arith.constant 0 : i32
    return %c0_i32, %arg0 : i32, i32
  }
}

</mosaic_0001>

<llo_original>
// kernel: simplenet_forward.1
$region0: #{simplenet_forward.1}
  #allocation0 [shape = 'u32[]', space=smem, size = 0x4, offset = 0x4, fixed_abs, tag = 'smem constant byte address 0x4 - core index']
  #allocation1 [shape = 'u32[144,128]{1,0:T(1,128)}', space=vmem, size = 0x12000, scoped, tag = 'internal scratch']
  %s0 = inlined_call_operand.vmem [shape: f32[3,3], index: 0, kind: input, shape index: {}]
  %s1 = inlined_call_operand.vmem [shape: f32[3], index: 1, kind: input, shape index: {}]
  %s2 = inlined_call_operand.vmem [shape: f32[2,3], index: 2, kind: input, shape index: {}]
  %s3 = inlined_call_operand.vmem [shape: f32[2], index: 3, kind: input, shape index: {}]
  %s4 = inlined_call_operand.vmem [shape: f32[3,128], index: 4, kind: input, shape index: {}]
  %s5 = inlined_call_operand.vmem [shape: f32[2,128], index: 5, kind: output, shape index: {}]
  %s6 = sld [smem:[#allocation0]]
  $region46: #{simplenet_forward.1} parent=0
    _
  %s8 = ssub.s32 1, %s6
  %s9 = scalar_select 0, %s8, %s6
  $region1: #{simplenet_forward.1} parent=0
    #allocation2 [shape = 'u8[2048]{0}', space=smem, size = 0x800, scoped, tag = 'input window, operand 0, single buffered']
    #allocation3 [shape = 's32[1]{0}', space=sflag, size = 0x4, scoped, tag = 'scoped memory for simplenet_forward.1']
    #allocation4 [shape = 'u8[512]{0}', space=smem, size = 0x200, scoped, tag = 'input window, operand 1, single buffered']
    #allocation5 [shape = 's32[1]{0}', space=sflag, size = 0x4, scoped, tag = 'scoped memory for simplenet_forward.1']
    #allocation6 [shape = 'u8[1024]{0}', space=smem, size = 0x400, scoped, tag = 'input window, operand 2, single buffered']
    #allocation7 [shape = 'u8[512]{0}', space=smem, size = 0x200, scoped, tag = 'input window, operand 3, single buffered']
    #allocation8 [shape = 's32[1]{0}', space=sflag, size = 0x4, scoped, tag = 'scoped memory for simplenet_forward.1']
    %10 = vsyncpa [#allocation3], 0
    %11 = vsyncpa [#allocation5], 0
    %12 = vsyncpa [#allocation8], 0
    // Predicated region
    $region2: #{simplenet_forward.1} parent=1 // pred_check
      _
    $region3: #{simplenet_forward.1} parent=1 // pred_check_branch
      %14 = sbr.rel (0) target = $region5
    $region4: #{simplenet_forward.1} parent=1 // pred_region
      %s16 = ssub.s32 64, 64
      %17 = vsyncadd [#allocation3], %s16
      %s19 = sshll.u32 %s0, 4
      %s20 = int_to_ptr.vmem [resolvable:$true] %s19
      %22 = dma.vmem_to_smem %s20, 64, [#allocation2], [#allocation3]
    $region5: #{simplenet_forward.1} parent=1 // pred_fallthru
      _
    // Predicated region
    $region6: #{simplenet_forward.1} parent=1 // pred_check
      _
    $region7: #{simplenet_forward.1} parent=1 // pred_check_branch
      %24 = sbr.rel (0) target = $region9
    $region8: #{simplenet_forward.1} parent=1 // pred_region
      %s26 = ssub.s32 16, 16
      %27 = vsyncadd [#allocation5], %s26
      %s29 = sshll.u32 %s1, 4
      %s30 = int_to_ptr.vmem [resolvable:$true] %s29
      %32 = dma.vmem_to_smem %s30, 16, [#allocation4], [#allocation5]
    $region9: #{simplenet_forward.1} parent=1 // pred_fallthru
      _
    // Predicated region
    $region10: #{simplenet_forward.1} parent=1 // pred_check
      _
    $region11: #{simplenet_forward.1} parent=1 // pred_check_branch
      %34 = sbr.rel (0) target = $region13
    $region12: #{simplenet_forward.1} parent=1 // pred_region
      %s36 = ssub.s32 32, 32
      %37 = vsyncadd [#allocation5], %s36
      %s39 = sshll.u32 %s2, 4
      %s40 = int_to_ptr.vmem [resolvable:$true] %s39
      %42 = dma.vmem_to_smem %s40, 32, [#allocation6], [#allocation5]
    $region13: #{simplenet_forward.1} parent=1 // pred_fallthru
      _
    // Predicated region
    $region14: #{simplenet_forward.1} parent=1 // pred_check
      _
    $region15: #{simplenet_forward.1} parent=1 // pred_check_branch
      %44 = sbr.rel (0) target = $region17
    $region16: #{simplenet_forward.1} parent=1 // pred_region
      %s46 = ssub.s32 16, 16
      %47 = vsyncadd [#allocation8], %s46
      %s49 = sshll.u32 %s3, 4
      %s50 = int_to_ptr.vmem [resolvable:$true] %s49
      %52 = dma.vmem_to_smem %s50, 16, [#allocation7], [#allocation8]
    $region17: #{simplenet_forward.1} parent=1 // pred_fallthru
      _
    // Predicated region
    $region18: #{simplenet_forward.1} parent=1 // pred_check
      _
    $region19: #{simplenet_forward.1} parent=1 // pred_check_branch
      %54 = sbr.rel (0) target = $region21
    $region20: #{simplenet_forward.1} parent=1 // pred_region
      _
    $region21: #{simplenet_forward.1} parent=1 // pred_fallthru
      _
    // Predicated region
    $region22: #{simplenet_forward.1} parent=1 // pred_check
      _
    $region23: #{simplenet_forward.1} parent=1 // pred_check_branch
      %56 = sbr.rel (0) target = $region25
    $region24: #{simplenet_forward.1} parent=1 // pred_region
      %57 = dma.done [#allocation3], 64
    $region25: #{simplenet_forward.1} parent=1 // pred_fallthru
      _
    // Predicated region
    $region26: #{simplenet_forward.1} parent=1 // pred_check
      _
    $region27: #{simplenet_forward.1} parent=1 // pred_check_branch
      %59 = sbr.rel (0) target = $region29
    $region28: #{simplenet_forward.1} parent=1 // pred_region
      %60 = dma.done [#allocation5], 16
    $region29: #{simplenet_forward.1} parent=1 // pred_fallthru
      _
    // Predicated region
    $region30: #{simplenet_forward.1} parent=1 // pred_check
      _
    $region31: #{simplenet_forward.1} parent=1 // pred_check_branch
      %62 = sbr.rel (0) target = $region33
    $region32: #{simplenet_forward.1} parent=1 // pred_region
      %63 = dma.done [#allocation5], 32
    $region33: #{simplenet_forward.1} parent=1 // pred_fallthru
      _
    // Predicated region
    $region34: #{simplenet_forward.1} parent=1 // pred_check
      _
    $region35: #{simplenet_forward.1} parent=1 // pred_check_branch
      %65 = sbr.rel (0) target = $region37
    $region36: #{simplenet_forward.1} parent=1 // pred_region
      %66 = dma.done [#allocation8], 16
    $region37: #{simplenet_forward.1} parent=1 // pred_fallthru
      _
    %67 = sfence
    %v68 = vld [vmem:[%s4] sm:$0x7]
    %s69 = sld [smem:[#allocation4]]
    %s70 = sld [smem:[#allocation2]]
    %v71 = vstv %s70
    %v72 = vmul.f32 %v71, %v68
    %v73 = vstv %s69
    %v74 = vadd.f32 %v73, %v72
    %s75 = sld [smem:[#allocation2 + $0x1]]
    %v76 = vstv %s75
    %v77 = vmul.f32 %v76, %v68
    %v79 = vrot.slane %v77, 1
    %v81 = vadd.f32 %v74, %v79
    %s82 = sld [smem:[#allocation2 + $0x2]]
    %v83 = vstv %s82
    %v84 = vmul.f32 %v83, %v68
    %v86 = vrot.slane %v84, 2
    %v88 = vadd.f32 %v81, %v86
    %v89 = vmax.f32 %v88, 0.0
    %s90 = sld [smem:[#allocation4 + $0x1]]
    %s91 = sld [smem:[#allocation2 + $0x80]]
    %v92 = vstv %s91
    %v93 = vmul.f32 %v92, %v68
    %v94 = vstv %s90
    %v95 = vadd.f32 %v94, %v93
    %s96 = sld [smem:[#allocation2 + $0x81]]
    %v97 = vstv %s96
    %v98 = vmul.f32 %v97, %v68
    %v100 = vrot.slane %v98, 1
    %v102 = vadd.f32 %v95, %v100
    %s103 = sld [smem:[#allocation2 + $0x82]]
    %v104 = vstv %s103
    %v105 = vmul.f32 %v104, %v68
    %v107 = vrot.slane %v105, 2
    %v109 = vadd.f32 %v102, %v107
    %v110 = vmax.f32 %v109, 0.0
    %s111 = sld [smem:[#allocation4 + $0x2]]
    %s112 = sld [smem:[#allocation2 + $0x100]]
    %v113 = vstv %s112
    %v114 = vmul.f32 %v113, %v68
    %v115 = vstv %s111
    %v116 = vadd.f32 %v115, %v114
    %s117 = sld [smem:[#allocation2 + $0x101]]
    %v118 = vstv %s117
    %v119 = vmul.f32 %v118, %v68
    %v121 = vrot.slane %v119, 1
    %v123 = vadd.f32 %v116, %v121
    %s124 = sld [smem:[#allocation2 + $0x102]]
    %v125 = vstv %s124
    %v126 = vmul.f32 %v125, %v68
    %v128 = vrot.slane %v126, 2
    %v130 = vadd.f32 %v123, %v128
    %v131 = vmax.f32 %v130, 0.0
    %s132 = sld [smem:[#allocation7]]
    %s133 = sld [smem:[#allocation6]]
    %v134 = vstv %s133
    %v135 = vmul.f32 %v134, %v89
    %v136 = vstv %s132
    %v137 = vadd.f32 %v136, %v135
    %s138 = sld [smem:[#allocation6 + $0x1]]
    %v139 = vstv %s138
    %v140 = vmul.f32 %v139, %v110
    %v141 = vadd.f32 %v137, %v140
    %s142 = sld [smem:[#allocation6 + $0x2]]
    %v143 = vstv %s142
    %v144 = vmul.f32 %v143, %v131
    %v145 = vadd.f32 %v141, %v144
    %146 = vst [vmem:[%s5] sm:$0x1] %v145
    %s147 = sld [smem:[#allocation7 + $0x1]]
    %s148 = sld [smem:[#allocation6 + $0x80]]
    %v149 = vstv %s148
    %v150 = vmul.f32 %v149, %v89
    %v151 = vstv %s147
    %v152 = vadd.f32 %v151, %v150
    %s153 = sld [smem:[#allocation6 + $0x81]]
    %v154 = vstv %s153
    %v155 = vmul.f32 %v154, %v110
    %v156 = vadd.f32 %v152, %v155
    %s157 = sld [smem:[#allocation6 + $0x82]]
    %v158 = vstv %s157
    %v159 = vmul.f32 %v158, %v131
    %v160 = vadd.f32 %v156, %v159
    %161 = vst [vmem:[%s5 + $0x1] sm:$0x1] %v160
    // Predicated region
    $region38: #{simplenet_forward.1} parent=1 // pred_check
      _
    $region39: #{simplenet_forward.1} parent=1 // pred_check_branch
      %163 = sbr.rel (0) target = $region41
    $region40: #{simplenet_forward.1} parent=1 // pred_region
      _
    $region41: #{simplenet_forward.1} parent=1 // pred_fallthru
      _
    // Predicated region
    $region42: #{simplenet_forward.1} parent=1 // pred_check
      _
    $region43: #{simplenet_forward.1} parent=1 // pred_check_branch
      %165 = sbr.rel (0) target = $region45
    $region44: #{simplenet_forward.1} parent=1 // pred_region
      _
    $region45: #{simplenet_forward.1} parent=1 // pred_fallthru
      _
    %166 = vsyncpa [#allocation3], 1
    %167 = vsyncpa [#allocation5], 1
    %168 = vsyncpa [#allocation8], 1

</llo_original>
